<compile_context>
chip_gen: v7x
topology: tpu7x:2x2x1
jax: 0.10.0
libtpu: 0.0.40
codegen_flags: <defaults>
</compile_context>

<pallas_src>
import functools
import math

import jax
import jax.numpy as jnp
from jax.experimental import pallas as pl
from jax.experimental.pallas import tpu as pltpu

_BN_EPS = 1e-5

# Per channel-block VMEM use: in + out blocks double-buffered by the pipeline (4x)
# plus ~4x full-block f32 temporaries inside the kernel (x copy, y, y*y, result).
_VMEM_BLOCK_FACTOR = 8
_MAX_C_TILE = 64          # bounds only the per-step SMEM affine gather unroll


# --------------------------- shared traced helpers ---------------------------

def _aggregate(x_ref, adj_ref):
    """Load the block and run the (rows, L) x (L, L) MXU matmul in f32."""
    n, c_tile, tp, l = x_ref.shape
    x = x_ref[...].astype(jnp.float32)
    adj = adj_ref[...].astype(jnp.float32)
    y = jnp.dot(x.reshape(-1, l), adj, preferred_element_type=jnp.float32)
    return x, y.reshape(n, c_tile, tp, l)


def _sum_per_channel(z):
    """(n, c, tp, l) -> (1, c, 1, 1): staged single-axis reductions (lane, sublane, outer)."""
    z = jnp.sum(z, axis=3, keepdims=True)
    z = jnp.sum(z, axis=2, keepdims=True)
    return jnp.sum(z, axis=0, keepdims=True)


def _affine_from_smem(gamma_sm, beta_sm, c0, c_tile):
    """Gather the c_tile per-channel BN affine params from SMEM as (1, c, 1, 1)."""
    g = jnp.concatenate(
        [jnp.full((1, 1, 1, 1), gamma_sm[c0 + i], dtype=jnp.float32)
         for i in range(c_tile)], axis=1)
    b = jnp.concatenate(
        [jnp.full((1, 1, 1, 1), beta_sm[c0 + i], dtype=jnp.float32)
         for i in range(c_tile)], axis=1)
    return g, b


def _bn_relu_residual(y, x, mean, var, gamma_b, beta_b, out_dtype):
    inv_std = jax.lax.rsqrt(var + _BN_EPS)
    scale = inv_std * gamma_b
    shift = beta_b - mean * scale
    return (jnp.maximum(y * scale + shift, 0.0) + x).astype(out_dtype)


# --------------------------------- kernels -----------------------------------

def _gcn_kernel_single_pass(gamma_sm, beta_sm, x_ref, adj_ref, o_ref):
    """Whole (N, c_tile, Tp, L) slab resident: stats + normalize in one visit."""
    cb = pl.program_id(0)
    n, c_tile, tp, l = x_ref.shape
    c0 = cb * c_tile

    x, y = _aggregate(x_ref, adj_ref)

    inv_cnt = 1.0 / float(n * tp * l)                   # == 1 / (N * T * V)
    mean = _sum_per_channel(y) * inv_cnt                # (1, c, 1, 1)
    msq = _sum_per_channel(y * y) * inv_cnt
    var = jnp.maximum(msq - mean * mean, 0.0)           # biased (training-mode) variance

    gamma_b, beta_b = _affine_from_smem(gamma_sm, beta_sm, c0, c_tile)
    o_ref[...] = _bn_relu_residual(y, x, mean, var, gamma_b, beta_b, o_ref.dtype)


def _gcn_kernel_two_pass(count, gamma_sm, beta_sm, x_ref, adj_ref, o_ref,
                         sum_ref, sq_ref):
    """Fallback for slabs too big for VMEM: pass 0 streams per-channel sum/sumsq
    over batch tiles, pass 1 recomputes y and normalizes/stores each tile."""
    cb = pl.program_id(0)
    p = pl.program_id(1)          # 0 = stats sweep, 1 = normalize sweep
    mb = pl.program_id(2)
    nb, c_tile, tp, l = x_ref.shape
    c0 = cb * c_tile

    x, y = _aggregate(x_ref, adj_ref)

    @pl.when((p == 0) & (mb == 0))
    def _():
        sum_ref[...] = jnp.zeros_like(sum_ref)
        sq_ref[...] = jnp.zeros_like(sq_ref)

    @pl.when(p == 0)
    def _():
        sum_ref[...] += _sum_per_channel(y)
        sq_ref[...] += _sum_per_channel(y * y)

    @pl.when(p == 1)
    def _():
        inv_cnt = 1.0 / count
        mean = sum_ref[...] * inv_cnt
        var = jnp.maximum(sq_ref[...] * inv_cnt - mean * mean, 0.0)
        gamma_b, beta_b = _affine_from_smem(gamma_sm, beta_sm, c0, c_tile)
        o_ref[...] = _bn_relu_residual(y, x, mean, var, gamma_b, beta_b, o_ref.dtype)


# ------------------------------ host-side sizing -----------------------------

def _round_up(a, m):
    return ((a + m - 1) // m) * m


def _block_bytes(n_rows, c_tile, tp, lanes, dtype_bytes=4):
    # VMEM tile of an (n_rows, c_tile, tp, lanes) block: last two dims pad to (8, 128).
    return n_rows * c_tile * _round_up(tp, 8) * _round_up(lanes, 128) * dtype_bytes


def _vmem_limits():
    """Per-generation VMEM budget: 128 MiB parts (v5e/v6e) get ~100 MiB, v7x ~56 MiB."""
    try:
        cap = int(pltpu.get_tpu_info().vmem_capacity_bytes)
        limit = min(cap * 7 // 8, 100 * 1024 * 1024)
    except Exception:
        limit = 56 * 1024 * 1024          # conservative: fits v7x's 64 MiB per TensorCore
    budget = int(limit * 0.85)            # headroom for adj + Mosaic internal scratch
    return limit, budget


def _pick_t_blk(T, V):
    """Largest divisor of T with t_blk * V <= 128 (lane-dense packing factor)."""
    if V > 128:
        return 1
    max_blk = max(1, 128 // V)
    for d in range(min(max_blk, T), 0, -1):
        if T % d == 0:
            return d
    return 1


def _pick_c_tile(N, C, Tp, L, budget):
    per_ch = _VMEM_BLOCK_FACTOR * _block_bytes(N, 1, Tp, L)
    fitting = [d for d in range(1, C + 1)
               if C % d == 0 and d <= _MAX_C_TILE and per_ch * d <= budget]
    if not fitting:
        return None                        # even one channel slab does not fit -> two-pass
    # Prefer >= 4 grid steps (>= 2 pipelined steps per v7x TensorCore), then >= 2.
    for min_steps in (4, 2, 1):
        ok = [d for d in fitting if C // d >= min_steps]
        if ok:
            return max(ok)
    return max(fitting)


def _pick_n_tile(N, Tp, L, budget):
    for d in range(N, 0, -1):
        if N % d == 0 and _VMEM_BLOCK_FACTOR * _block_bytes(d, 1, Tp, L) <= budget:
            return d
    return 1   # best effort; extremely large single-row slabs just rely on the raised limit


# --------------------------------- wrapper ------------------------------------

def graph_convolution_forward(x, adj, gamma, beta, *, c_tile=None, n_tile=None,
                              force_two_pass=False):
    """x: (N, C, T, V); adj: (V, V); gamma/beta: (C,) BatchNorm1d affine params."""
    N, C, T, V = x.shape
    gamma = gamma.astype(jnp.float32)
    beta = beta.astype(jnp.float32)
    vmem_limit, budget = _vmem_limits()

    # Lane-dense packing: fold t_blk time steps into the minor dim (free reshape) and
    # use the block-diagonal adjacency I_{t_blk} (x) adj so the matmul is (M, L) x (L, L).
    t_blk = _pick_t_blk(T, V)
    Tp, L = T // t_blk, t_blk * V
    x_p = x.reshape(N, C, Tp, L)
    adj_blk = adj if t_blk == 1 else jnp.kron(jnp.eye(t_blk, dtype=adj.dtype), adj)

    if c_tile is None and not force_two_pass:
        c_tile = _pick_c_tile(N, C, Tp, L, budget)
    two_pass = force_two_pass or c_tile is None

    if not two_pass:
        assert C % c_tile == 0
        out_p = pl.pallas_call(
            _gcn_kernel_single_pass,
            out_shape=jax.ShapeDtypeStruct((N, C, Tp, L), x.dtype),
            grid_spec=pltpu.PrefetchScalarGridSpec(
                num_scalar_prefetch=2,          # gamma, beta -> SMEM
                grid=(C // c_tile,),
                in_specs=[
                    pl.BlockSpec((N, c_tile, Tp, L), lambda cb, g, b: (0, cb, 0, 0)),
                    # adj_blk: constant block index -> fetched once, kept resident.
                    pl.BlockSpec((L, L), lambda cb, g, b: (0, 0)),
                ],
                out_specs=pl.BlockSpec((N, c_tile, Tp, L),
                                       lambda cb, g, b: (0, cb, 0, 0)),
            ),
            compiler_params=pltpu.CompilerParams(
                dimension_semantics=("parallel",),
                vmem_limit_bytes=vmem_limit),
        )(gamma, beta, x_p, adj_blk)
    else:
        # Two-pass fallback: grid (channel, pass, batch-tile). During the stats pass
        # (p==0) the output block index is held constant, so the untouched buffer is
        # never written back; the normalize pass (p==1) writes every block exactly once.
        if n_tile is None:
            n_tile = _pick_n_tile(N, Tp, L, budget)
        assert N % n_tile == 0
        kernel = functools.partial(_gcn_kernel_two_pass, float(N * Tp * L))
        out_p = pl.pallas_call(
            kernel,
            out_shape=jax.ShapeDtypeStruct((N, C, Tp, L), x.dtype),
            grid_spec=pltpu.PrefetchScalarGridSpec(
                num_scalar_prefetch=2,
                grid=(C, 2, N // n_tile),
                in_specs=[
                    pl.BlockSpec((n_tile, 1, Tp, L),
                                 lambda cb, p, mb, g, b: (mb, cb, 0, 0)),
                    pl.BlockSpec((L, L), lambda cb, p, mb, g, b: (0, 0)),
                ],
                out_specs=pl.BlockSpec((n_tile, 1, Tp, L),
                                       lambda cb, p, mb, g, b: (mb * p, cb, 0, 0)),
                scratch_shapes=[pltpu.VMEM((1, 1, 1, 1), jnp.float32),   # per-channel sum
                                pltpu.VMEM((1, 1, 1, 1), jnp.float32)],  # per-channel sumsq
            ),
            compiler_params=pltpu.CompilerParams(
                dimension_semantics=("parallel", "arbitrary", "arbitrary"),
                vmem_limit_bytes=vmem_limit),
        )(gamma, beta, x_p, adj_blk)

    return out_p.reshape(N, C, T, V)


# ------------------------------ reference & test ------------------------------

def _reference_forward(x, adj, gamma, beta):
    y = jnp.einsum('nctv,vw->nctw', x, adj)
    mean = jnp.mean(y, axis=(0, 2, 3), keepdims=True)
    var = jnp.mean((y - mean) ** 2, axis=(0, 2, 3), keepdims=True)
    y_hat = (y - mean) / jnp.sqrt(var + _BN_EPS)
    y_hat = y_hat * gamma[None, :, None, None] + beta[None, :, None, None]
    return jnp.maximum(y_hat, 0.0) + x


if __name__ == "__main__":
    # Small shapes consistent with the module: N batch, C channels (= in_features
    # = out_features, required by the residual + BN), T time steps, V graph nodes.
    N, C, T, V = 2, 4, 8, 16
    in_features = out_features = C

    key = jax.random.PRNGKey(0)
    kx, kadj, kw = jax.random.split(key, 3)

    x = jax.random.normal(kx, (N, C, T, V), dtype=jnp.float32)

    # Deterministic symmetric row-normalized adjacency over V nodes.
    a = jax.random.uniform(kadj, (V, V), dtype=jnp.float32)
    a = (a + a.T) * 0.5 + jnp.eye(V, dtype=jnp.float32)
    adj = a / jnp.sum(a, axis=1, keepdims=True)

    # Module parameters (deterministic init, mirroring __init__):
    stdv = 1.0 / math.sqrt(out_features)
    weight = jax.random.uniform(kw, (in_features, out_features),
                                minval=-stdv, maxval=stdv,
                                dtype=jnp.float32)   # unused in forward (as in PyTorch)
    gamma = jnp.ones((out_features,), dtype=jnp.float32)   # BN weight default
    beta = jnp.zeros((out_features,), dtype=jnp.float32)   # BN bias default

    ref = _reference_forward(x, adj, gamma, beta)

    # Main (single-pass, lane-dense) path.
    out = graph_convolution_forward(x, adj, gamma, beta)
    out = jax.block_until_ready(out)
    assert out.shape == (N, C, T, V)
    assert jnp.allclose(out, ref, atol=1e-4, rtol=1e-4), "single-pass mismatch"

    # Exercise the large-shape fallback (two-pass, batch-tiled) on the same data.
    out2 = graph_convolution_forward(x, adj, gamma, beta,
                                     force_two_pass=True, n_tile=1)
    out2 = jax.block_until_ready(out2)
    assert jnp.allclose(out2, ref, atol=1e-4, rtol=1e-4), "two-pass mismatch"

    print("KERNEL_OK")
</pallas_src>

<mosaic_0001>
module attributes {stable_mosaic.version = 11 : i64} {
  func.func @_gcn_kernel_single_pass(%arg0: i32, %arg1: memref<4xf32, #tpu.memory_space<smem>>, %arg2: memref<4xf32, #tpu.memory_space<smem>>, %arg3: memref<2x1x1x128xf32, #tpu.memory_space<vmem>>, %arg4: memref<128x128xf32, #tpu.memory_space<vmem>>, %arg5: memref<2x1x1x128xf32, #tpu.memory_space<vmem>>) attributes {dimension_semantics = [#tpu.dimension_semantics<parallel>], iteration_bounds = array<i64: 4>, scalar_prefetch = 2 : i64, scratch_operands = 0 : i64, tpu.core_type = #tpu.core_type<tc>, window_params = [{transform_indices = @transform_0, window_bounds = array<i64: 2, 1, 1, 128>}, {pipeline_mode = #tpu.pipeline_mode<synchronous>, transform_indices = @transform_1, window_bounds = array<i64: 128, 128>}, {transform_indices = @transform_2, window_bounds = array<i64: 2, 1, 1, 128>}]} {
    %c1_i32 = arith.constant 1 : i32
    %0 = arith.muli %arg0, %c1_i32 : i32
    %c0 = arith.constant 0 : index
    %c0_0 = arith.constant 0 : index
    %c0_1 = arith.constant 0 : index
    %c0_2 = arith.constant 0 : index
    %1 = vector.load %arg3[%c0, %c0_0, %c0_1, %c0_2] : memref<2x1x1x128xf32, #tpu.memory_space<vmem>>, vector<2x1x1x128xf32>
    %c0_3 = arith.constant 0 : index
    %c0_4 = arith.constant 0 : index
    %2 = vector.load %arg4[%c0_3, %c0_4] : memref<128x128xf32, #tpu.memory_space<vmem>>, vector<128x128xf32>
    %3 = vector.shape_cast %1 : vector<2x1x1x128xf32> to vector<2x128xf32>
    %cst = arith.constant dense<0.000000e+00> : vector<2x128xf32>
    %4 = tpu.matmul %3, %2, %cst {dimension_numbers = #tpu.dot_dimension_numbers<[1], [0], [0], [1], [0, 0, 1, 1], [], []>} : vector<2x128xf32>, vector<128x128xf32>, vector<2x128xf32> -> vector<2x128xf32>
    %5 = vector.shape_cast %4 : vector<2x128xf32> to vector<2x1x1x128xf32>
    %cst_5 = arith.constant dense<0.000000e+00> : vector<2x1x1xf32>
    %6 = vector.multi_reduction <add>, %5, %cst_5 [3] : vector<2x1x1x128xf32> to vector<2x1x1xf32>
    %7 = vector.shape_cast %6 : vector<2x1x1xf32> to vector<2x1x1x1xf32>
    %cst_6 = arith.constant dense<0.000000e+00> : vector<2x1x1xf32>
    %8 = vector.multi_reduction <add>, %7, %cst_6 [2] : vector<2x1x1x1xf32> to vector<2x1x1xf32>
    %9 = vector.shape_cast %8 : vector<2x1x1xf32> to vector<2x1x1x1xf32>
    %cst_7 = arith.constant dense<0.000000e+00> : vector<1x1x1xf32>
    %10 = vector.multi_reduction <add>, %9, %cst_7 [0] : vector<2x1x1x1xf32> to vector<1x1x1xf32>
    %11 = vector.shape_cast %10 : vector<1x1x1xf32> to vector<1x1x1x1xf32>
    %cst_8 = arith.constant 3.906250e-03 : f32
    %12 = vector.broadcast %cst_8 : f32 to vector<1x1x1x1xf32>
    %13 = arith.mulf %11, %12 : vector<1x1x1x1xf32>
    %14 = arith.mulf %5, %5 : vector<2x1x1x128xf32>
    %cst_9 = arith.constant dense<0.000000e+00> : vector<2x1x1xf32>
    %15 = vector.multi_reduction <add>, %14, %cst_9 [3] : vector<2x1x1x128xf32> to vector<2x1x1xf32>
    %16 = vector.shape_cast %15 : vector<2x1x1xf32> to vector<2x1x1x1xf32>
    %cst_10 = arith.constant dense<0.000000e+00> : vector<2x1x1xf32>
    %17 = vector.multi_reduction <add>, %16, %cst_10 [2] : vector<2x1x1x1xf32> to vector<2x1x1xf32>
    %18 = vector.shape_cast %17 : vector<2x1x1xf32> to vector<2x1x1x1xf32>
    %cst_11 = arith.constant dense<0.000000e+00> : vector<1x1x1xf32>
    %19 = vector.multi_reduction <add>, %18, %cst_11 [0] : vector<2x1x1x1xf32> to vector<1x1x1xf32>
    %20 = vector.shape_cast %19 : vector<1x1x1xf32> to vector<1x1x1x1xf32>
    %cst_12 = arith.constant 3.906250e-03 : f32
    %21 = vector.broadcast %cst_12 : f32 to vector<1x1x1x1xf32>
    %22 = arith.mulf %20, %21 : vector<1x1x1x1xf32>
    %23 = arith.mulf %13, %13 : vector<1x1x1x1xf32>
    %24 = arith.subf %22, %23 : vector<1x1x1x1xf32>
    %cst_13 = arith.constant 0.000000e+00 : f32
    %25 = vector.broadcast %cst_13 : f32 to vector<1x1x1x1xf32>
    %26 = arith.maximumf %24, %25 : vector<1x1x1x1xf32>
    %c0_i32 = arith.constant 0 : i32
    %27 = arith.addi %0, %c0_i32 : i32
    %28 = arith.index_cast %27 : i32 to index
    %29 = memref.load %arg1[%28] : memref<4xf32, #tpu.memory_space<smem>>
    %30 = vector.broadcast %29 : f32 to vector<1x1x1x1xf32>
    %c0_i32_14 = arith.constant 0 : i32
    %31 = arith.addi %0, %c0_i32_14 : i32
    %32 = arith.index_cast %31 : i32 to index
    %33 = memref.load %arg2[%32] : memref<4xf32, #tpu.memory_space<smem>>
    %34 = vector.broadcast %33 : f32 to vector<1x1x1x1xf32>
    %cst_15 = arith.constant 9.99999974E-6 : f32
    %35 = vector.broadcast %cst_15 : f32 to vector<1x1x1x1xf32>
    %36 = arith.addf %26, %35 : vector<1x1x1x1xf32>
    %37 = math.rsqrt %36 : vector<1x1x1x1xf32>
    %38 = arith.mulf %37, %30 : vector<1x1x1x1xf32>
    %39 = arith.mulf %13, %38 : vector<1x1x1x1xf32>
    %40 = arith.subf %34, %39 : vector<1x1x1x1xf32>
    %41 = vector.broadcast %38 : vector<1x1x1x1xf32> to vector<2x1x1x128xf32>
    %42 = arith.mulf %5, %41 : vector<2x1x1x128xf32>
    %43 = vector.broadcast %40 : vector<1x1x1x1xf32> to vector<2x1x1x128xf32>
    %44 = arith.addf %42, %43 : vector<2x1x1x128xf32>
    %cst_16 = arith.constant 0.000000e+00 : f32
    %45 = vector.broadcast %cst_16 : f32 to vector<2x1x1x128xf32>
    %46 = arith.maximumf %44, %45 : vector<2x1x1x128xf32>
    %47 = arith.addf %46, %1 : vector<2x1x1x128xf32>
    %c0_17 = arith.constant 0 : index
    %c0_18 = arith.constant 0 : index
    %c0_19 = arith.constant 0 : index
    %c0_20 = arith.constant 0 : index
    %48 = vector.load %arg5[%c0_17, %c0_18, %c0_19, %c0_20] : memref<2x1x1x128xf32, #tpu.memory_space<vmem>>, vector<2x1x1x128xf32>
    tpu.vector_store %arg5[%c0_17, %c0_18, %c0_19, %c0_20], %47 {strides = array<i32>} : memref<2x1x1x128xf32, #tpu.memory_space<vmem>>, vector<2x1x1x128xf32>,
    return
  }
  func.func @transform_0(%arg0: i32, %arg1: memref<4xf32, #tpu.memory_space<smem>>, %arg2: memref<4xf32, #tpu.memory_space<smem>>) -> (i32, i32, i32, i32) {
    %c0_i32 = arith.constant 0 : i32
    %c0_i32_0 = arith.constant 0 : i32
    %c0_i32_1 = arith.constant 0 : i32
    %c0_i32_2 = arith.constant 0 : i32
    return %c0_i32, %arg0, %c0_i32_0, %c0_i32_1 : i32, i32, i32, i32
  }
  func.func @transform_1(%arg0: i32, %arg1: memref<4xf32, #tpu.memory_space<smem>>, %arg2: memref<4xf32, #tpu.memory_space<smem>>) -> (i32, i32) {
    %c0_i32 = arith.constant 0 : i32
    %c0_i32_0 = arith.constant 0 : i32
    %c0_i32_1 = arith.constant 0 : i32
    return %c0_i32, %c0_i32_0 : i32, i32
  }
  func.func @transform_2(%arg0: i32, %arg1: memref<4xf32, #tpu.memory_space<smem>>, %arg2: memref<4xf32, #tpu.memory_space<smem>>) -> (i32, i32, i32, i32) {
    %c0_i32 = arith.constant 0 : i32
    %c0_i32_0 = arith.constant 0 : i32
    %c0_i32_1 = arith.constant 0 : i32
    %c0_i32_2 = arith.constant 0 : i32
    return %c0_i32, %arg0, %c0_i32_0, %c0_i32_1 : i32, i32, i32, i32
  }
}

</mosaic_0001>

<llo_original>
// kernel: tpu_custom_call.1
$region0: #{tpu_custom_call.1}
  #allocation0 [shape = 'u32[]', space=smem, size = 0x4, offset = 0x4, fixed_abs, tag = 'smem constant byte address 0x4 - core index']
  #allocation1 [shape = 'u32[144,128]{1,0:T(1,128)}', space=vmem, size = 0x12000, scoped, tag = 'internal scratch']
  #allocation2 [shape = 's32[1]{0}', space=sflag, size = 0x4, scoped, tag = 'scoped memory for tpu_custom_call.1']
  #allocation3 [shape = 'u8[512]{0}', space=smem, size = 0x200, scoped, tag = 'prefetched SMEM operand 0']
  #allocation4 [shape = 'u8[512]{0}', space=smem, size = 0x200, scoped, tag = 'prefetched SMEM operand 1']
  %s0 = inlined_call_operand.hbm [shape: f32[4], index: 0, kind: input, shape index: {}]
  %s1 = inlined_call_operand.vmem [shape: f32[4], index: 1, kind: input, shape index: {}]
  %s2 = inlined_call_operand.hbm [shape: f32[2,4,1,128], index: 2, kind: input, shape index: {}]
  %s3 = inlined_call_operand.hbm [shape: f32[128,128], index: 3, kind: input, shape index: {}]
  %s4 = inlined_call_operand.hbm [shape: f32[2,4,1,128], index: 4, kind: output, shape index: {}]
  %s5 = sld [smem:[#allocation0]]
  $region49: #{tpu_custom_call.1} parent=0
    _
  %s7 = ssub.s32 1, %s5
  %s8 = scalar_select 0, %s7, %s5
  %10 = dma.hbm_to_smem %s0, 16, [#allocation3], [#allocation2]
  %s11 = sshll.u32 %s1, 4
  %s12 = int_to_ptr.vmem [resolvable:$true] %s11
  %14 = dma.vmem_to_smem %s12, 16, [#allocation4], [#allocation2]
  %15 = dma.done [#allocation2], 32
  %16 = sfence
  $region1: #{tpu_custom_call.1} parent=0
    #allocation5 [shape = 'u8[2048]{0}', space=vmem, size = 0x800, scoped, tag = 'input window, operand 2']
    #allocation6 [shape = 's32[2]{0}', space=sflag, size = 0x8, scoped, tag = 'scoped memory for tpu_custom_call.1']
    #allocation7 [shape = 's32[2]{0}', space=sflag, size = 0x8, scoped, tag = 'scoped memory for tpu_custom_call.1']
    #allocation8 [shape = 'u8[65536]{0}', space=vmem, size = 0x10000, scoped, tag = 'input window, operand 3, single buffered']
    #allocation9 [shape = 's32[1]{0}', space=sflag, size = 0x4, scoped, tag = 'scoped memory for tpu_custom_call.1']
    #allocation10 [shape = 'u8[2048]{0}', space=vmem, size = 0x800, scoped, tag = 'output window, operand 0']
    %17 = vsyncpa [#allocation6], 0
    %s18 = scalar_lea.sflag [#allocation6], 1
    %19 = vsyncpa %s18, 0
    %20 = vsyncpa [#allocation9], 0
    %21 = vsyncpa [#allocation7], 0
    %s22 = scalar_lea.sflag [#allocation7], 1
    %23 = vsyncpa %s22, 0
    loop: start=0, step=1, limit=6
    $region2: #{tpu_custom_call.1} parent=1 // loop_pre_header
      _
    $region3: #{tpu_custom_call.1} parent=1 // loop_header
      %s25 = sphi 0, %s29
      %p26 = scmp.ge.s32.totalorder %s25, 6
      %s35 = sphi 0, %s37
      %s38 = sphi 0, %s35
      %s39 = sphi 0, %s38
      %s55 = sphi 0, %s39
      %s59 = sphi 0, %s59
      %s61 = sphi 0, %s59
      %s62 = sphi 0, %s61
      %s76 = sphi 0, %s62
      %s82 = sphi 0, %s84
      %s85 = sphi 0, %s82
      %s86 = sphi 0, %s85
      %s102 = sphi 0, %s86
    $region4: #{tpu_custom_call.1} parent=1 // loop_header_branch
      %28 = sbr.rel (%p26) target = $region8
    $region5: #{tpu_custom_call.1} parent=1 // loop_body
      %s30 = ssub.s32 %s25, 1
      %s31 = ssub.s32 %s25, 2
      %s32 = sadd.s32 %s25, 1
      %s33 = ssub.s32 %s25, %s32
      %p34 = scmp.eq.s32.totalorder %s33, 0
      %s36 = sadd.s32 %s35, 1
      %s37 = scalar_select %p34, %s35, %s36
      %p40 = pneg %p34
      %p41 = scmp.eq.s32.totalorder %s25, 3
      %p42 = por %p40, %p41
      %p43 = scmp.ne.s32.totalorder %s35, %s38
      %p44 = scmp.eq.s32.totalorder %s25, 0
      %p45 = por %p43, %p44
      %p46 = scmp.ne.s32.totalorder %s35, %s38
      %p47 = scmp.eq.s32.totalorder %s30, 3
      %p48 = por %p46, %p47
      %p49 = scmp.ne.s32.totalorder %s38, %s39
      %p50 = scmp.eq.s32.totalorder %s30, 0
      %p51 = por %p49, %p50
      %p52 = scmp.ne.s32.totalorder %s38, %s39
      %p53 = scmp.eq.s32.totalorder %s31, 3
      %p54 = por %p52, %p53
      %p56 = scmp.ne.s32.totalorder %s39, %s55
      %p57 = scmp.eq.s32.totalorder %s31, 0
      %p58 = por %p56, %p57
      %s60 = sadd.s32 %s59, 1
      %p63 = scmp.eq.s32.totalorder %s25, 3
      %p64 = scmp.ne.s32.totalorder %s59, %s61
      %p65 = scmp.eq.s32.totalorder %s25, 0
      %p66 = por %p64, %p65
      %p67 = scmp.ne.s32.totalorder %s59, %s61
      %p68 = scmp.eq.s32.totalorder %s30, 3
      %p69 = por %p67, %p68
      %p70 = scmp.ne.s32.totalorder %s61, %s62
      %p71 = scmp.eq.s32.totalorder %s30, 0
      %p72 = por %p70, %p71
      %p73 = scmp.ne.s32.totalorder %s61, %s62
      %p74 = scmp.eq.s32.totalorder %s31, 3
      %p75 = por %p73, %p74
      %p77 = scmp.ne.s32.totalorder %s62, %s76
      %p78 = scmp.eq.s32.totalorder %s31, 0
      %p79 = por %p77, %p78
      %s80 = ssub.s32 %s25, %s32
      %p81 = scmp.eq.s32.totalorder %s80, 0
      %s83 = sadd.s32 %s82, 1
      %s84 = scalar_select %p81, %s82, %s83
      %p87 = pneg %p81
      %p88 = scmp.eq.s32.totalorder %s25, 3
      %p89 = por %p87, %p88
      %p90 = scmp.ne.s32.totalorder %s82, %s85
      %p91 = scmp.eq.s32.totalorder %s25, 0
      %p92 = por %p90, %p91
      %p93 = scmp.ne.s32.totalorder %s82, %s85
      %p94 = scmp.eq.s32.totalorder %s30, 3
      %p95 = por %p93, %p94
      %p96 = scmp.ne.s32.totalorder %s85, %s86
      %p97 = scmp.eq.s32.totalorder %s30, 0
      %p98 = por %p96, %p97
      %p99 = scmp.ne.s32.totalorder %s85, %s86
      %p100 = scmp.eq.s32.totalorder %s31, 3
      %p101 = por %p99, %p100
      %p103 = scmp.ne.s32.totalorder %s86, %s102
      %p104 = scmp.eq.s32.totalorder %s31, 0
      %p105 = por %p103, %p104
      %p106 = scmp.le.s32.totalorder 1, %s25
      %p107 = scmp.lt.s32.totalorder %s25, 5
      %p108 = pnand %p106, %p107
      %p109 = pneg %p108
      // Predicated region
      $region9: #{tpu_custom_call.1} parent=5 // pred_check
        _
      $region10: #{tpu_custom_call.1} parent=5 // pred_check_branch
        %111 = sbr.rel (%p108) target = $region12
      $region11: #{tpu_custom_call.1} parent=5 // pred_region
        %s112 = ssub.s32 %s25, 1
        // Predicated region
        $region13: #{tpu_custom_call.1} parent=11 // pred_check
          %p113 = pneg %p72
        $region14: #{tpu_custom_call.1} parent=11 // pred_check_branch
          %115 = sbr.rel (%p113) target = $region16
        $region15: #{tpu_custom_call.1} parent=11 // pred_region
          %s117 = ssub.s32 2048, 2048
          %118 = vsyncadd [#allocation9], %s117
          %s119 = sshll.u32 [#allocation8], 4
          %s120 = int_to_ptr.vmem [resolvable:$true] %s119
          %125 = dma.hbm_to_vmem [thread:$0]  %s3, 2048, %s120, [#allocation9], 128, 128, 8
        $region16: #{tpu_custom_call.1} parent=11 // pred_fallthru
          _
      $region12: #{tpu_custom_call.1} parent=5 // pred_fallthru
        _
      %p126 = scmp.lt.s32.totalorder %s25, 4
      // Predicated region
      $region17: #{tpu_custom_call.1} parent=5 // pred_check
        %p127 = pneg %p126
      $region18: #{tpu_custom_call.1} parent=5 // pred_check_branch
        %129 = sbr.rel (%p127) target = $region20
      $region19: #{tpu_custom_call.1} parent=5 // pred_region
        // Predicated region
        $region21: #{tpu_custom_call.1} parent=19 // pred_check
          %p130 = pneg %p45
        $region22: #{tpu_custom_call.1} parent=19 // pred_check_branch
          %132 = sbr.rel (%p130) target = $region24
        $region23: #{tpu_custom_call.1} parent=19 // pred_region
          %s133 = sand.u32 %s35, 1
          %s134 = scalar_lea.sflag [#allocation6], %s133
          %s135 = sand.u32 %s35, 1
          %s136 = smul.addr %s135, 2
          %s137 = scalar_lea.vmem [#allocation5], %s136
          %s139 = ssub.s32 32, 32
          %140 = vsyncadd %s134, %s139
          %s141 = smul.addr %s25, 16
          %s142 = scalar_lea.hbm %s2, %s141
          %s143 = sshll.u32 %s137, 4
          %s144 = int_to_ptr.vmem [resolvable:$true] %s143
          %149 = dma.hbm_to_vmem [thread:$0]  %s142, 32, %s144, %s134, 64, 16, 1
        $region24: #{tpu_custom_call.1} parent=19 // pred_fallthru
          _
      $region20: #{tpu_custom_call.1} parent=5 // pred_fallthru
        _
      %p150 = scmp.le.s32.totalorder 1, %s25
      %p151 = scmp.lt.s32.totalorder %s25, 5
      %p152 = pnand %p150, %p151
      %p153 = pneg %p152
      // Predicated region
      $region25: #{tpu_custom_call.1} parent=5 // pred_check
        _
      $region26: #{tpu_custom_call.1} parent=5 // pred_check_branch
        %155 = sbr.rel (%p152) target = $region28
      $region27: #{tpu_custom_call.1} parent=5 // pred_region
        %s156 = ssub.s32 %s25, 1
        %s157 = sand.u32 %s38, 1
        %s158 = scalar_lea.sflag [#allocation6], %s157
        %s159 = sand.u32 %s38, 1
        %s160 = smul.addr %s159, 2
        %s161 = scalar_lea.vmem [#allocation5], %s160
        // Predicated region
        $region29: #{tpu_custom_call.1} parent=27 // pred_check
          %p162 = pneg %p51
        $region30: #{tpu_custom_call.1} parent=27 // pred_check_branch
          %164 = sbr.rel (%p162) target = $region32
        $region31: #{tpu_custom_call.1} parent=27 // pred_region
          %165 = dma.done %s158, 32
        $region32: #{tpu_custom_call.1} parent=27 // pred_fallthru
          _
        // Predicated region
        $region33: #{tpu_custom_call.1} parent=27 // pred_check
          %p166 = pneg %p72
        $region34: #{tpu_custom_call.1} parent=27 // pred_check_branch
          %168 = sbr.rel (%p166) target = $region36
        $region35: #{tpu_custom_call.1} parent=27 // pred_region
          %169 = dma.done [#allocation9], 2048
        $region36: #{tpu_custom_call.1} parent=27 // pred_fallthru
          _
        %s170 = sand.u32 %s38, 1
        %s171 = scalar_lea.sflag [#allocation6], %s170
        %s172 = sand.u32 %s38, 1
        %s173 = smul.addr %s172, 2
        %s174 = scalar_lea.vmem [#allocation5], %s173
        %p175 = pneg %p51
        %p176 = pneg %p48
        %p177 = pneg %p72
        %p178 = pneg %p69
        %p179 = pneg %p98
        %p180 = pneg %p95
        %s181 = sand.u32 %s85, 1
        %s182 = scalar_lea.sflag [#allocation7], %s181
        %s183 = sand.u32 %s85, 1
        %s184 = smul.addr %s183, 2
        %s185 = scalar_lea.vmem [#allocation10], %s184
        %v186 = vld [vmem:[%s161] sm:$0x1]
        %v187 = vld [vmem:[%s161 + $0x1] sm:$0x1]
        %v188 = vld [vmem:[#allocation8] sm:$0xff]
        %v189 = vld [vmem:[#allocation8 + $0x8] sm:$0xff]
        %v190 = vld [vmem:[#allocation8 + $0x10] sm:$0xff]
        %v191 = vld [vmem:[#allocation8 + $0x18] sm:$0xff]
        %v192 = vld [vmem:[#allocation8 + $0x20] sm:$0xff]
        %v193 = vld [vmem:[#allocation8 + $0x28] sm:$0xff]
        %v194 = vld [vmem:[#allocation8 + $0x30] sm:$0xff]
        %v195 = vld [vmem:[#allocation8 + $0x38] sm:$0xff]
        %v196 = vld [vmem:[#allocation8 + $0x40] sm:$0xff]
        %v197 = vld [vmem:[#allocation8 + $0x48] sm:$0xff]
        %v198 = vld [vmem:[#allocation8 + $0x50] sm:$0xff]
        %v199 = vld [vmem:[#allocation8 + $0x58] sm:$0xff]
        %v200 = vld [vmem:[#allocation8 + $0x60] sm:$0xff]
        %v201 = vld [vmem:[#allocation8 + $0x68] sm:$0xff]
        %v202 = vld [vmem:[#allocation8 + $0x70] sm:$0xff]
        %v203 = vld [vmem:[#allocation8 + $0x78] sm:$0xff]
        %v206 = vcombine.low %v186, %v187
        %v208 = vunpack.c.l.s4 1966171168
        %v209 = vunpack.c.0.s8 %v208
        %v210 = vlaneseq
        %v211 = vshrl.u32 %v210, 7
        %v212 = vsub.s32 %v209, %v211
        %v213 = vrot.slane %v206, %v212
        %v215 = vunpack.c.l.s4 1966171168
        %v216 = vunpack.c.0.s8 %v215
        %v217 = vlaneseq
        %v218 = vshrl.u32 %v217, 7
        %v219 = vsub.s32 %v216, %v218
        %v220 = vrot.slane %v213, %v219
        %222 = vmatprep.subr.mxu0 0.0
        %223 = vmatpush1.msra.mxu0 %v188
        %224 = vmatprep.subr.mxu0 0.0
        %225 = vmatpush1.msra.mxu0 %v189
        %226 = vmatprep.subr.mxu0 0.0
        %227 = vmatpush1.msra.mxu0 %v190
        %228 = vmatprep.subr.mxu0 0.0
        %229 = vmatpush1.msra.mxu0 %v191
        %230 = vmatprep.subr.mxu0 0.0
        %231 = vmatpush1.msra.mxu0 %v192
        %232 = vmatprep.subr.mxu0 0.0
        %233 = vmatpush1.msra.mxu0 %v193
        %234 = vmatprep.subr.mxu0 0.0
        %235 = vmatpush1.msra.mxu0 %v194
        %236 = vmatprep.subr.mxu0 0.0
        %237 = vmatpush1.msra.mxu0 %v195
        %238 = vmatprep.subr.mxu0 0.0
        %239 = vmatpush1.msra.mxu0 %v196
        %240 = vmatprep.subr.mxu0 0.0
        %241 = vmatpush1.msra.mxu0 %v197
        %242 = vmatprep.subr.mxu0 0.0
        %243 = vmatpush1.msra.mxu0 %v198
        %244 = vmatprep.subr.mxu0 0.0
        %245 = vmatpush1.msra.mxu0 %v199
        %246 = vmatprep.subr.mxu0 0.0
        %247 = vmatpush1.msra.mxu0 %v200
        %248 = vmatprep.subr.mxu0 0.0
        %249 = vmatpush1.msra.mxu0 %v201
        %250 = vmatprep.subr.mxu0 0.0
        %251 = vmatpush1.msra.mxu0 %v202
        %252 = vmatprep.subr.mxu0 0.0
        %253 = vmatpush1.msra.mxu0 %v203
        %254 = vmatprep.subr.mxu0 0.0
        %255 = vmatpush1.msra.mxu0 0.0
        %256 = vmatprep.subr.mxu0 0.0
        %257 = vmatpush1.msra.mxu0 0.0
        %258 = vmatprep.subr.mxu0 0.0
        %259 = vmatpush1.msra.mxu0 0.0
        %260 = vmatprep.subr.mxu0 0.0
        %261 = vmatpush1.msra.mxu0 0.0
        %262 = vmatprep.subr.mxu0 0.0
        %263 = vmatpush1.msra.mxu0 0.0
        %264 = vmatprep.subr.mxu0 0.0
        %265 = vmatpush1.msra.mxu0 0.0
        %266 = vmatprep.subr.mxu0 0.0
        %267 = vmatpush1.msra.mxu0 0.0
        %268 = vmatprep.subr.mxu0 0.0
        %269 = vmatpush1.msra.mxu0 0.0
        %270 = vmatprep.subr.mxu0 0.0
        %271 = vmatpush1.msra.mxu0 0.0
        %272 = vmatprep.subr.mxu0 0.0
        %273 = vmatpush1.msra.mxu0 0.0
        %274 = vmatprep.subr.mxu0 0.0
        %275 = vmatpush1.msra.mxu0 0.0
        %276 = vmatprep.subr.mxu0 0.0
        %277 = vmatpush1.msra.mxu0 0.0
        %278 = vmatprep.subr.mxu0 0.0
        %279 = vmatpush1.msra.mxu0 0.0
        %280 = vmatprep.subr.mxu0 0.0
        %281 = vmatpush1.msra.mxu0 0.0
        %282 = vmatprep.subr.mxu0 0.0
        %283 = vmatpush1.msra.mxu0 0.0
        %284 = vmatprep.subr.mxu0 0.0
        %285 = vmatpush1.msra.mxu0 0.0
        %286 = vmatprep.mubr.f32.mxu0 0.0
        %287 = vmatmul.mubr.f32.gmra.mrb[0].mxu0 %v220
        %v288 = vpop.f32.mrb[0].mxu0
        %v289 = vadd.f32 0.0, %v288
        %v290 = vpop.f32.mrb[0].mxu0
        %291 = vdwg.mxu0
        %v294 = vunpack.c.l.s4 1966171168
        %v295 = vunpack.c.0.s8 %v294
        %v296 = vlaneseq
        %v297 = vshrl.u32 %v296, 7
        %v298 = vsub.s32 %v295, %v297
        %v299 = vrot.slane %v289, %v298
        %v300 = vcombine.high %v299, %v299
        %v302 = vunpack.c.l.s4 1966171168
        %v303 = vunpack.c.0.s8 %v302
        %v304 = vlaneseq
        %v305 = vshrl.u32 %v304, 7
        %v306 = vsub.s32 %v303, %v305
        %v307 = vrot.slane %v299, %v306
        %v309 = vunpack.c.l.s4 1966171168
        %v310 = vunpack.c.0.s8 %v309
        %v311 = vlaneseq
        %v312 = vshrl.u32 %v311, 7
        %v313 = vsub.s32 %v310, %v312
        %v314 = vrot.slane %v300, %v313
        %vm317 = vcmask 1040384
        %v318 = vsel %vm317, %v307, 0.0
        %319 = vadd.xlane.f32.xlu0 %v318
        %v320 = vpop.xlane.xlu0 %319
        %v321 = vsel %vm317, %v314, 0.0
        %322 = vadd.xlane.f32.xlu0 %v321
        %v323 = vpop.xlane.xlu0 %322
        %v324 = vadd.f32 %v320, 0.0
        %v325 = vadd.f32 %v323, 0.0
        %v326 = vsel %vm317, %v324, 0.0
        %v327 = vsel %vm317, %v325, 0.0
        %v328 = vadd.f32 %v326, %v327
        %v329 = vmul.f32 %v328, 0.00390625
        %v330 = vmul.f32 %v307, %v307
        %v331 = vmul.f32 %v314, %v314
        %v332 = vsel %vm317, %v330, 0.0
        %333 = vadd.xlane.f32.xlu0 %v332
        %v334 = vpop.xlane.xlu0 %333
        %v335 = vsel %vm317, %v331, 0.0
        %336 = vadd.xlane.f32.xlu0 %v335
        %v337 = vpop.xlane.xlu0 %336
        %v338 = vadd.f32 %v334, 0.0
        %v339 = vadd.f32 %v337, 0.0
        %v340 = vsel %vm317, %v338, 0.0
        %v341 = vsel %vm317, %v339, 0.0
        %v342 = vadd.f32 %v340, %v341
        %v343 = vmul.f32 %v342, 0.00390625
        %v344 = vmul.f32 %v329, %v329
        %v345 = vsub.f32 %v343, %v344
        %v346 = vmax.f32 %v345, 0.0
        %s347 = sld [smem:[#allocation3 + %s30]]
        %v348 = vstv %s347
        %s349 = sld [smem:[#allocation4 + %s30]]
        %v350 = vstv %s349
        %v351 = vadd.f32 %v346, 1e-05
        %v352 = vrsqrt.pop %v351
        %v353 = vmul.f32 %v352, %v348
        %v354 = vmul.f32 %v329, %v353
        %v355 = vsub.f32 %v350, %v354
        %v356 = vmul.f32 %v307, %v353
        %v357 = vmul.f32 %v314, %v353
        %v358 = vadd.f32 %v356, %v355
        %v359 = vadd.f32 %v357, %v355
        %v360 = vmax.f32 %v358, 0.0
        %v361 = vmax.f32 %v359, 0.0
        %v362 = vadd.f32 %v360, %v186
        %v363 = vadd.f32 %v361, %v187
        %364 = vst [vmem:[%s185] sm:$0x1] %v362
        %365 = vst [vmem:[%s185 + $0x1] sm:$0x1] %v363
        %s366 = sand.u32 %s85, 1
        %s367 = scalar_lea.sflag [#allocation7], %s366
        %s368 = sand.u32 %s85, 1
        %s369 = smul.addr %s368, 2
        %s370 = scalar_lea.vmem [#allocation10], %s369
        // Predicated region
        $region37: #{tpu_custom_call.1} parent=27 // pred_check
          %p371 = pneg %p95
        $region38: #{tpu_custom_call.1} parent=27 // pred_check_branch
          %373 = sbr.rel (%p371) target = $region40
        $region39: #{tpu_custom_call.1} parent=27 // pred_region
          %s375 = ssub.s32 32, 32
          %376 = vsyncadd %s367, %s375
          %s377 = smul.addr %s30, 16
          %s378 = scalar_lea.hbm %s4, %s377
          %s379 = sshll.u32 %s370, 4
          %s380 = int_to_ptr.vmem [resolvable:$true] %s379
          %385 = dma.vmem_to_hbm [thread:$0]  %s380, 32, %s378, %s367, 16, 64, 1
        $region40: #{tpu_custom_call.1} parent=27 // pred_fallthru
          _
      $region28: #{tpu_custom_call.1} parent=5 // pred_fallthru
        _
      %p386 = scmp.le.s32.totalorder 2, %s25
      // Predicated region
      $region41: #{tpu_custom_call.1} parent=5 // pred_check
        %p387 = pneg %p386
      $region42: #{tpu_custom_call.1} parent=5 // pred_check_branch
        %389 = sbr.rel (%p387) target = $region44
      $region43: #{tpu_custom_call.1} parent=5 // pred_region
        %s390 = ssub.s32 %s25, 2
        // Predicated region
        $region45: #{tpu_custom_call.1} parent=43 // pred_check
          %p391 = pneg %p101
        $region46: #{tpu_custom_call.1} parent=43 // pred_check_branch
          %393 = sbr.rel (%p391) target = $region48
        $region47: #{tpu_custom_call.1} parent=43 // pred_region
          %s394 = sand.u32 %s86, 1
          %s395 = scalar_lea.sflag [#allocation7], %s394
          %s396 = sand.u32 %s86, 1
          %s397 = smul.addr %s396, 2
          %s398 = scalar_lea.vmem [#allocation10], %s397
          %399 = dma.done %s395, 32
        $region48: #{tpu_custom_call.1} parent=43 // pred_fallthru
          _
      $region44: #{tpu_custom_call.1} parent=5 // pred_fallthru
        _
    $region6: #{tpu_custom_call.1} parent=1 // loop_footer
      %s29 = sadd.s32 1, %s25
    $region7: #{tpu_custom_call.1} parent=1 // loop_footer_branch
      %24 = sbr.rel target = $region3
    $region8: #{tpu_custom_call.1} parent=1 // loop_exit
      _
    %400 = vsyncpa [#allocation6], 1
    %s401 = scalar_lea.sflag [#allocation6], 1
    %402 = vsyncpa %s401, 1
    %403 = vsyncpa [#allocation9], 1
    %404 = vsyncpa [#allocation7], 1
    %s405 = scalar_lea.sflag [#allocation7], 1
    %406 = vsyncpa %s405, 1

</llo_original>
